<compile_context>
chip_gen: v5e
topology: v5e:2x2
jax: 0.10.0
libtpu: 0.0.40
codegen_flags: <defaults>
</compile_context>

<pallas_src>
import functools

import jax
import jax.numpy as jnp
import numpy as np
from jax import lax
from jax.experimental import pallas as pl
from jax.experimental.pallas import tpu as pltpu

LEAKY_SLOPE = 0.2
BN_EPS = 1e-5


def _leaky_relu(x):
    return jnp.where(x >= 0, x, LEAKY_SLOPE * x)


# ----------------------------------------------------------------------------
# Kernel
# ----------------------------------------------------------------------------
def mlp_d_kernel(x_ref, w1_ref, b1_ref, w2_ref, b2_ref, gamma_ref, beta_ref,
                 w3_ref, b3_ref, o_ref, sum_sc, sumsq_sc,
                 *, total_b, block_b, vpu_out):
    phase = pl.program_id(0)   # 0: accumulate BN batch stats, 1: normalize + output
    tile = pl.program_id(1)    # batch tile index

    @pl.when((phase == 0) & (tile == 0))
    def _init_stats():
        sum_sc[...] = jnp.zeros_like(sum_sc)
        sumsq_sc[...] = jnp.zeros_like(sumsq_sc)

    x = x_ref[...]

    # layer1 + LeakyReLU (weights pre-transposed: x @ W1t, no in-kernel .T)
    h1 = _leaky_relu(
        jnp.dot(x, w1_ref[...], preferred_element_type=jnp.float32) + b1_ref[...])

    # layer2 (pre-BatchNorm). Cast only for the MXU operand; accumulation is f32.
    z2 = jnp.dot(h1.astype(w2_ref.dtype), w2_ref[...],
                 preferred_element_type=jnp.float32) + b2_ref[...]

    @pl.when(phase == 0)
    def _accumulate_stats():
        # Exclude padded rows of a partial last tile from the batch statistics.
        row = tile * block_b + lax.broadcasted_iota(jnp.int32, (block_b, 1), 0)
        valid = row < total_b
        z2m = jnp.where(valid, z2, 0.0)
        sum_sc[...] += jnp.sum(z2m, axis=0, keepdims=True)
        sumsq_sc[...] += jnp.sum(z2m * z2m, axis=0, keepdims=True)

    @pl.when(phase == 1)
    def _normalize_and_output():
        inv_n = jnp.float32(1.0 / total_b)
        mean = sum_sc[...] * inv_n
        # biased (train-mode) variance; clamp tiny negative from cancellation
        var = jnp.maximum(sumsq_sc[...] * inv_n - mean * mean, 0.0)
        scale = gamma_ref[...] * lax.rsqrt(var + BN_EPS)
        h2 = _leaky_relu((z2 - mean) * scale + beta_ref[...])

        if vpu_out:
            # noutput == 1: VPU multiply + XLU lane reduce, no N=1 MXU matmul.
            w3_row = w3_ref[...].astype(jnp.float32)          # [1, h2]
            out = jnp.sum(h2 * w3_row, axis=-1, keepdims=True) + b3_ref[...]
        else:
            out = jnp.dot(h2.astype(w3_ref.dtype), w3_ref[...],
                          preferred_element_type=jnp.float32) + b3_ref[...]
        o_ref[...] = out.astype(o_ref.dtype)


# ----------------------------------------------------------------------------
# Host-side wrappers
# ----------------------------------------------------------------------------
def init_params(key, ninput, layers_str, noutput):
    """PyTorch-layout parameters, matching MLP_D.init_weights()."""
    sizes = [ninput] + [int(s) for s in layers_str.split("-")]
    assert len(sizes) == 3, "this script instantiates the 2-hidden-layer variant"
    h1, h2 = sizes[1], sizes[2]
    k1, k2, k3, kg = jax.random.split(key, 4)
    std = 0.02
    return {
        "w1": (jax.random.normal(k1, (h1, ninput)) * std).astype(jnp.float32),
        "b1": jnp.zeros((1, h1), jnp.float32),
        "w2": (jax.random.normal(k2, (h2, h1)) * std).astype(jnp.float32),
        "b2": jnp.zeros((1, h2), jnp.float32),
        "gamma": (jax.random.normal(kg, (1, h2)) * std).astype(jnp.float32),
        "beta": jnp.zeros((1, h2), jnp.float32),
        "w3": (jax.random.normal(k3, (noutput, h2)) * std).astype(jnp.float32),
        "b3": jnp.zeros((1, noutput), jnp.float32),
    }


def prepare_kernel_params(p, matmul_dtype=jnp.float32):
    """One-time host-side prep: pre-transpose Linear weights to [in, out] and
    optionally cast matmul operands to bf16 (recommended on v6e/v7x at large
    shapes). Biases / BN params stay f32."""
    noutput = p["w3"].shape[0]
    kp = {
        "w1t": jnp.asarray(p["w1"].T, matmul_dtype),
        "b1": jnp.asarray(p["b1"], jnp.float32),
        "w2t": jnp.asarray(p["w2"].T, matmul_dtype),
        "b2": jnp.asarray(p["b2"], jnp.float32),
        "gamma": jnp.asarray(p["gamma"], jnp.float32),
        "beta": jnp.asarray(p["beta"], jnp.float32),
        "b3": jnp.asarray(p["b3"], jnp.float32),
    }
    if noutput == 1:
        kp["w3k"] = jnp.asarray(p["w3"], matmul_dtype)      # [1, h2] row (VPU path)
    else:
        kp["w3k"] = jnp.asarray(p["w3"].T, matmul_dtype)    # [h2, noutput]
    return kp


def mlp_d_forward(x, kp, *, block_b=512):
    """x: [B, ninput]. kp: output of prepare_kernel_params. Returns [B, noutput] f32."""
    B, ninput = x.shape
    hidden1 = kp["w1t"].shape[1]
    hidden2 = kp["w2t"].shape[1]
    noutput = kp["b3"].shape[1]
    vpu_out = (noutput == 1)

    bt = B if B <= block_b else block_b
    num_tiles = pl.cdiv(B, bt)

    x = x.astype(kp["w1t"].dtype)

    kernel = functools.partial(mlp_d_kernel, total_b=B, block_b=bt, vpu_out=vpu_out)

    def full(arr):  # small resident param: one block == whole array, loaded once
        return pl.BlockSpec(arr.shape, lambda p, t: (0, 0))

    grid_spec = pltpu.PrefetchScalarGridSpec(
        num_scalar_prefetch=0,
        grid=(2, num_tiles),                       # (BN phase, batch tile)
        in_specs=[
            pl.BlockSpec((bt, ninput), lambda p, t: (t, 0)),   # x tiles (pipelined)
            full(kp["w1t"]), full(kp["b1"]),
            full(kp["w2t"]), full(kp["b2"]),
            full(kp["gamma"]), full(kp["beta"]),
            full(kp["w3k"]), full(kp["b3"]),
        ],
        # Phase 0 parks the (never-written) output window on block 0 so nothing
        # stale is written back to HBM; phase 1 walks the real output tiles.
        out_specs=pl.BlockSpec((bt, noutput), lambda p, t: (p * t, 0)),
        scratch_shapes=[pltpu.VMEM((1, hidden2), jnp.float32),   # sum(z2)
                        pltpu.VMEM((1, hidden2), jnp.float32)],  # sum(z2^2)
    )

    return pl.pallas_call(
        kernel,
        grid_spec=grid_spec,
        out_shape=jax.ShapeDtypeStruct((B, noutput), jnp.float32),
        compiler_params=pltpu.CompilerParams(
            dimension_semantics=("arbitrary", "arbitrary")),
    )(x, kp["w1t"], kp["b1"], kp["w2t"], kp["b2"],
      kp["gamma"], kp["beta"], kp["w3k"], kp["b3"])


def mlp_d_ref(x, p):
    """Pure-JAX reference of the PyTorch forward (train-mode BN, biased var)."""
    h1 = _leaky_relu(x @ p["w1"].T + p["b1"])
    z2 = h1 @ p["w2"].T + p["b2"]
    mean = jnp.mean(z2, axis=0, keepdims=True)
    var = jnp.mean((z2 - mean) ** 2, axis=0, keepdims=True)
    z2n = (z2 - mean) / jnp.sqrt(var + BN_EPS) * p["gamma"] + p["beta"]
    h2 = _leaky_relu(z2n)
    return h2 @ p["w3"].T + p["b3"]


# ----------------------------------------------------------------------------
if __name__ == "__main__":
    key = jax.random.PRNGKey(0)
    kx, kparam, kx2 = jax.random.split(key, 3)

    ninput, layers_str, noutput = 32, "64-64", 1
    params = init_params(kparam, ninput, layers_str, noutput)
    kp_f32 = prepare_kernel_params(params, jnp.float32)

    # --- small single-tile check (B=8), f32 ---
    B = 8
    x = jax.random.normal(kx, (B, ninput), dtype=jnp.float32)
    out = jax.block_until_ready(mlp_d_forward(x, kp_f32))
    ref = mlp_d_ref(x, params)
    assert out.shape == (B, noutput)
    np.testing.assert_allclose(np.asarray(out), np.asarray(ref), rtol=2e-5, atol=1e-5)

    # --- multi-tile check with a partial last tile: exercises the batch-tiled
    #     two-pass BatchNorm and the padded-row masking ---
    B2 = 300
    x2 = jax.random.normal(kx2, (B2, ninput), dtype=jnp.float32)
    out2 = jax.block_until_ready(mlp_d_forward(x2, kp_f32, block_b=128))
    ref2 = mlp_d_ref(x2, params)
    np.testing.assert_allclose(np.asarray(out2), np.asarray(ref2), rtol=2e-5, atol=1e-5)

    # --- bf16 matmul-operand path (v6e/v7x MXU), loose tolerance sanity check ---
    kp_bf16 = prepare_kernel_params(params, jnp.bfloat16)
    out_bf16 = jax.block_until_ready(mlp_d_forward(x, kp_bf16))
    np.testing.assert_allclose(np.asarray(out_bf16), np.asarray(ref),
                               rtol=2e-1, atol=2e-3)

    print("KERNEL_OK")
</pallas_src>

<mosaic_0001>
module attributes {stable_mosaic.version = 11 : i64} {
  func.func @mlp_d_kernel(%arg0: i32, %arg1: i32, %arg2: memref<8x32xf32, #tpu.memory_space<vmem>>, %arg3: memref<32x64xf32, #tpu.memory_space<vmem>>, %arg4: memref<1x64xf32, #tpu.memory_space<vmem>>, %arg5: memref<64x64xf32, #tpu.memory_space<vmem>>, %arg6: memref<1x64xf32, #tpu.memory_space<vmem>>, %arg7: memref<1x64xf32, #tpu.memory_space<vmem>>, %arg8: memref<1x64xf32, #tpu.memory_space<vmem>>, %arg9: memref<1x64xf32, #tpu.memory_space<vmem>>, %arg10: memref<1x1xf32, #tpu.memory_space<vmem>>, %arg11: memref<8x1xf32, #tpu.memory_space<vmem>>, %arg12: memref<1x64xf32, #tpu.memory_space<vmem>>, %arg13: memref<1x64xf32, #tpu.memory_space<vmem>>) attributes {dimension_semantics = [#tpu.dimension_semantics<arbitrary>, #tpu.dimension_semantics<arbitrary>], iteration_bounds = array<i64: 2, 1>, scalar_prefetch = 0 : i64, scratch_operands = 2 : i64, tpu.core_type = #tpu.core_type<tc>, window_params = [{transform_indices = @transform_0, window_bounds = array<i64: 8, 32>}, {pipeline_mode = #tpu.pipeline_mode<synchronous>, transform_indices = @transform_1, window_bounds = array<i64: 32, 64>}, {pipeline_mode = #tpu.pipeline_mode<synchronous>, transform_indices = @transform_2, window_bounds = array<i64: 1, 64>}, {pipeline_mode = #tpu.pipeline_mode<synchronous>, transform_indices = @transform_3, window_bounds = array<i64: 64, 64>}, {pipeline_mode = #tpu.pipeline_mode<synchronous>, transform_indices = @transform_4, window_bounds = array<i64: 1, 64>}, {pipeline_mode = #tpu.pipeline_mode<synchronous>, transform_indices = @transform_5, window_bounds = array<i64: 1, 64>}, {pipeline_mode = #tpu.pipeline_mode<synchronous>, transform_indices = @transform_6, window_bounds = array<i64: 1, 64>}, {pipeline_mode = #tpu.pipeline_mode<synchronous>, transform_indices = @transform_7, window_bounds = array<i64: 1, 64>}, {pipeline_mode = #tpu.pipeline_mode<synchronous>, transform_indices = @transform_8, window_bounds = array<i64: 1, 1>}, {transform_indices = @transform_9, window_bounds = array<i64: 8, 1>}]} {
    %c0_i32 = arith.constant 0 : i32
    %0 = arith.cmpi eq, %arg0, %c0_i32 : i32
    %c0_i32_0 = arith.constant 0 : i32
    %1 = arith.cmpi eq, %arg1, %c0_i32_0 : i32
    %2 = arith.andi %0, %1 : i1
    %3 = arith.extui %2 : i1 to i32
    %c0_i32_1 = arith.constant 0 : i32
    %4 = arith.cmpi ne, %3, %c0_i32_1 : i32
    scf.if %4 {
      %cst_17 = arith.constant 0.000000e+00 : f32
      %27 = vector.broadcast %cst_17 : f32 to vector<1x64xf32>
      %c0_18 = arith.constant 0 : index
      %c0_19 = arith.constant 0 : index
      %28 = vector.load %arg12[%c0_18, %c0_19] : memref<1x64xf32, #tpu.memory_space<vmem>>, vector<1x64xf32>
      tpu.vector_store %arg12[%c0_18, %c0_19], %27 {strides = array<i32>} : memref<1x64xf32, #tpu.memory_space<vmem>>, vector<1x64xf32>,
      %cst_20 = arith.constant 0.000000e+00 : f32
      %29 = vector.broadcast %cst_20 : f32 to vector<1x64xf32>
      %c0_21 = arith.constant 0 : index
      %c0_22 = arith.constant 0 : index
      %30 = vector.load %arg13[%c0_21, %c0_22] : memref<1x64xf32, #tpu.memory_space<vmem>>, vector<1x64xf32>
      tpu.vector_store %arg13[%c0_21, %c0_22], %29 {strides = array<i32>} : memref<1x64xf32, #tpu.memory_space<vmem>>, vector<1x64xf32>,
    } else {
    }
    %c0 = arith.constant 0 : index
    %c0_2 = arith.constant 0 : index
    %5 = vector.load %arg2[%c0, %c0_2] : memref<8x32xf32, #tpu.memory_space<vmem>>, vector<8x32xf32>
    %c0_3 = arith.constant 0 : index
    %c0_4 = arith.constant 0 : index
    %6 = vector.load %arg3[%c0_3, %c0_4] : memref<32x64xf32, #tpu.memory_space<vmem>>, vector<32x64xf32>
    %cst = arith.constant dense<0.000000e+00> : vector<8x64xf32>
    %7 = tpu.matmul %5, %6, %cst {dimension_numbers = #tpu.dot_dimension_numbers<[1], [0], [0], [1], [0, 0, 1, 1], [], []>} : vector<8x32xf32>, vector<32x64xf32>, vector<8x64xf32> -> vector<8x64xf32>
    %c0_5 = arith.constant 0 : index
    %c0_6 = arith.constant 0 : index
    %8 = vector.load %arg4[%c0_5, %c0_6] : memref<1x64xf32, #tpu.memory_space<vmem>>, vector<1x64xf32>
    %9 = vector.broadcast %8 : vector<1x64xf32> to vector<8x64xf32>
    %10 = arith.addf %7, %9 : vector<8x64xf32>
    %cst_7 = arith.constant 0.000000e+00 : f32
    %11 = vector.broadcast %cst_7 : f32 to vector<8x64xf32>
    %12 = arith.cmpf oge, %10, %11 : vector<8x64xf32>
    %cst_8 = arith.constant 2.000000e-01 : f32
    %13 = vector.broadcast %cst_8 : f32 to vector<8x64xf32>
    %14 = arith.mulf %13, %10 : vector<8x64xf32>
    %15 = arith.select %12, %10, %14 : vector<8x64xi1>, vector<8x64xf32>
    %c0_9 = arith.constant 0 : index
    %c0_10 = arith.constant 0 : index
    %16 = vector.load %arg5[%c0_9, %c0_10] : memref<64x64xf32, #tpu.memory_space<vmem>>, vector<64x64xf32>
    %cst_11 = arith.constant dense<0.000000e+00> : vector<8x64xf32>
    %17 = tpu.matmul %15, %16, %cst_11 {dimension_numbers = #tpu.dot_dimension_numbers<[1], [0], [0], [1], [0, 0, 1, 1], [], []>} : vector<8x64xf32>, vector<64x64xf32>, vector<8x64xf32> -> vector<8x64xf32>
    %c0_12 = arith.constant 0 : index
    %c0_13 = arith.constant 0 : index
    %18 = vector.load %arg6[%c0_12, %c0_13] : memref<1x64xf32, #tpu.memory_space<vmem>>, vector<1x64xf32>
    %19 = vector.broadcast %18 : vector<1x64xf32> to vector<8x64xf32>
    %20 = arith.addf %17, %19 : vector<8x64xf32>
    %c0_i32_14 = arith.constant 0 : i32
    %21 = arith.cmpi eq, %arg0, %c0_i32_14 : i32
    %22 = arith.extui %21 : i1 to i32
    %c0_i32_15 = arith.constant 0 : i32
    %23 = arith.cmpi ne, %22, %c0_i32_15 : i32
    scf.if %23 {
      %c8_i32 = arith.constant 8 : i32
      %27 = arith.muli %arg1, %c8_i32 : i32
      %28 = tpu.iota {dimensions = array<i32: 0>} : vector<8x1xi32>
      %29 = vector.broadcast %27 : i32 to vector<8x1xi32>
      %30 = arith.addi %29, %28 : vector<8x1xi32>
      %c8_i32_17 = arith.constant 8 : i32
      %31 = vector.broadcast %c8_i32_17 : i32 to vector<8x1xi32>
      %32 = arith.cmpi slt, %30, %31 : vector<8x1xi32>
      %cst_18 = arith.constant 0.000000e+00 : f32
      %33 = vector.shape_cast %32 : vector<8x1xi1> to vector<8x1xi1>
      %34 = vector.broadcast %33 : vector<8x1xi1> to vector<8x64xi1>
      %35 = vector.broadcast %cst_18 : f32 to vector<8x64xf32>
      %36 = arith.select %34, %20, %35 : vector<8x64xi1>, vector<8x64xf32>
      %c0_19 = arith.constant 0 : index
      %c0_20 = arith.constant 0 : index
      %37 = vector.load %arg12[%c0_19, %c0_20] : memref<1x64xf32, #tpu.memory_space<vmem>>, vector<1x64xf32>
      %cst_21 = arith.constant dense<0.000000e+00> : vector<64xf32>
      %38 = vector.multi_reduction <add>, %36, %cst_21 [0] : vector<8x64xf32> to vector<64xf32>
      %39 = vector.shape_cast %38 : vector<64xf32> to vector<1x64xf32>
      %40 = arith.addf %37, %39 : vector<1x64xf32>
      %c0_22 = arith.constant 0 : index
      %c0_23 = arith.constant 0 : index
      %41 = vector.load %arg12[%c0_22, %c0_23] : memref<1x64xf32, #tpu.memory_space<vmem>>, vector<1x64xf32>
      tpu.vector_store %arg12[%c0_22, %c0_23], %40 {strides = array<i32>} : memref<1x64xf32, #tpu.memory_space<vmem>>, vector<1x64xf32>,
      %c0_24 = arith.constant 0 : index
      %c0_25 = arith.constant 0 : index
      %42 = vector.load %arg13[%c0_24, %c0_25] : memref<1x64xf32, #tpu.memory_space<vmem>>, vector<1x64xf32>
      %43 = arith.mulf %36, %36 : vector<8x64xf32>
      %cst_26 = arith.constant dense<0.000000e+00> : vector<64xf32>
      %44 = vector.multi_reduction <add>, %43, %cst_26 [0] : vector<8x64xf32> to vector<64xf32>
      %45 = vector.shape_cast %44 : vector<64xf32> to vector<1x64xf32>
      %46 = arith.addf %42, %45 : vector<1x64xf32>
      %c0_27 = arith.constant 0 : index
      %c0_28 = arith.constant 0 : index
      %47 = vector.load %arg13[%c0_27, %c0_28] : memref<1x64xf32, #tpu.memory_space<vmem>>, vector<1x64xf32>
      tpu.vector_store %arg13[%c0_27, %c0_28], %46 {strides = array<i32>} : memref<1x64xf32, #tpu.memory_space<vmem>>, vector<1x64xf32>,
    } else {
    }
    %c1_i32 = arith.constant 1 : i32
    %24 = arith.cmpi eq, %arg0, %c1_i32 : i32
    %25 = arith.extui %24 : i1 to i32
    %c0_i32_16 = arith.constant 0 : i32
    %26 = arith.cmpi ne, %25, %c0_i32_16 : i32
    scf.if %26 {
      %c0_17 = arith.constant 0 : index
      %c0_18 = arith.constant 0 : index
      %27 = vector.load %arg12[%c0_17, %c0_18] : memref<1x64xf32, #tpu.memory_space<vmem>>, vector<1x64xf32>
      %cst_19 = arith.constant 1.250000e-01 : f32
      %28 = vector.broadcast %cst_19 : f32 to vector<1x64xf32>
      %29 = arith.mulf %27, %28 : vector<1x64xf32>
      %c0_20 = arith.constant 0 : index
      %c0_21 = arith.constant 0 : index
      %30 = vector.load %arg13[%c0_20, %c0_21] : memref<1x64xf32, #tpu.memory_space<vmem>>, vector<1x64xf32>
      %cst_22 = arith.constant 1.250000e-01 : f32
      %31 = vector.broadcast %cst_22 : f32 to vector<1x64xf32>
      %32 = arith.mulf %30, %31 : vector<1x64xf32>
      %33 = arith.mulf %29, %29 : vector<1x64xf32>
      %34 = arith.subf %32, %33 : vector<1x64xf32>
      %cst_23 = arith.constant 0.000000e+00 : f32
      %35 = vector.broadcast %cst_23 : f32 to vector<1x64xf32>
      %36 = arith.maximumf %34, %35 : vector<1x64xf32>
      %c0_24 = arith.constant 0 : index
      %c0_25 = arith.constant 0 : index
      %37 = vector.load %arg7[%c0_24, %c0_25] : memref<1x64xf32, #tpu.memory_space<vmem>>, vector<1x64xf32>
      %cst_26 = arith.constant 9.99999974E-6 : f32
      %38 = vector.broadcast %cst_26 : f32 to vector<1x64xf32>
      %39 = arith.addf %36, %38 : vector<1x64xf32>
      %40 = math.rsqrt %39 : vector<1x64xf32>
      %41 = arith.mulf %37, %40 : vector<1x64xf32>
      %42 = vector.broadcast %29 : vector<1x64xf32> to vector<8x64xf32>
      %43 = arith.subf %20, %42 : vector<8x64xf32>
      %44 = vector.broadcast %41 : vector<1x64xf32> to vector<8x64xf32>
      %45 = arith.mulf %43, %44 : vector<8x64xf32>
      %c0_27 = arith.constant 0 : index
      %c0_28 = arith.constant 0 : index
      %46 = vector.load %arg8[%c0_27, %c0_28] : memref<1x64xf32, #tpu.memory_space<vmem>>, vector<1x64xf32>
      %47 = vector.broadcast %46 : vector<1x64xf32> to vector<8x64xf32>
      %48 = arith.addf %45, %47 : vector<8x64xf32>
      %cst_29 = arith.constant 0.000000e+00 : f32
      %49 = vector.broadcast %cst_29 : f32 to vector<8x64xf32>
      %50 = arith.cmpf oge, %48, %49 : vector<8x64xf32>
      %cst_30 = arith.constant 2.000000e-01 : f32
      %51 = vector.broadcast %cst_30 : f32 to vector<8x64xf32>
      %52 = arith.mulf %51, %48 : vector<8x64xf32>
      %53 = arith.select %50, %48, %52 : vector<8x64xi1>, vector<8x64xf32>
      %c0_31 = arith.constant 0 : index
      %c0_32 = arith.constant 0 : index
      %54 = vector.load %arg9[%c0_31, %c0_32] : memref<1x64xf32, #tpu.memory_space<vmem>>, vector<1x64xf32>
      %55 = vector.broadcast %54 : vector<1x64xf32> to vector<8x64xf32>
      %56 = arith.mulf %53, %55 : vector<8x64xf32>
      %cst_33 = arith.constant dense<0.000000e+00> : vector<8xf32>
      %57 = vector.multi_reduction <add>, %56, %cst_33 [1] : vector<8x64xf32> to vector<8xf32>
      %58 = vector.shape_cast %57 : vector<8xf32> to vector<8x1xf32>
      %c0_34 = arith.constant 0 : index
      %c0_35 = arith.constant 0 : index
      %59 = vector.load %arg10[%c0_34, %c0_35] : memref<1x1xf32, #tpu.memory_space<vmem>>, vector<1x1xf32>
      %60 = vector.broadcast %59 : vector<1x1xf32> to vector<8x1xf32>
      %61 = arith.addf %58, %60 : vector<8x1xf32>
      %c0_36 = arith.constant 0 : index
      %c0_37 = arith.constant 0 : index
      %62 = vector.load %arg11[%c0_36, %c0_37] : memref<8x1xf32, #tpu.memory_space<vmem>>, vector<8x1xf32>
      tpu.vector_store %arg11[%c0_36, %c0_37], %61 {strides = array<i32>} : memref<8x1xf32, #tpu.memory_space<vmem>>, vector<8x1xf32>,
    } else {
    }
    return
  }
  func.func @transform_0(%arg0: i32, %arg1: i32) -> (i32, i32) {
    %c0_i32 = arith.constant 0 : i32
    %c0_i32_0 = arith.constant 0 : i32
    return %arg1, %c0_i32 : i32, i32
  }
  func.func @transform_1(%arg0: i32, %arg1: i32) -> (i32, i32) {
    %c0_i32 = arith.constant 0 : i32
    %c0_i32_0 = arith.constant 0 : i32
    %c0_i32_1 = arith.constant 0 : i32
    return %c0_i32, %c0_i32_0 : i32, i32
  }
  func.func @transform_2(%arg0: i32, %arg1: i32) -> (i32, i32) {
    %c0_i32 = arith.constant 0 : i32
    %c0_i32_0 = arith.constant 0 : i32
    %c0_i32_1 = arith.constant 0 : i32
    return %c0_i32, %c0_i32_0 : i32, i32
  }
  func.func @transform_3(%arg0: i32, %arg1: i32) -> (i32, i32) {
    %c0_i32 = arith.constant 0 : i32
    %c0_i32_0 = arith.constant 0 : i32
    %c0_i32_1 = arith.constant 0 : i32
    return %c0_i32, %c0_i32_0 : i32, i32
  }
  func.func @transform_4(%arg0: i32, %arg1: i32) -> (i32, i32) {
    %c0_i32 = arith.constant 0 : i32
    %c0_i32_0 = arith.constant 0 : i32
    %c0_i32_1 = arith.constant 0 : i32
    return %c0_i32, %c0_i32_0 : i32, i32
  }
  func.func @transform_5(%arg0: i32, %arg1: i32) -> (i32, i32) {
    %c0_i32 = arith.constant 0 : i32
    %c0_i32_0 = arith.constant 0 : i32
    %c0_i32_1 = arith.constant 0 : i32
    return %c0_i32, %c0_i32_0 : i32, i32
  }
  func.func @transform_6(%arg0: i32, %arg1: i32) -> (i32, i32) {
    %c0_i32 = arith.constant 0 : i32
    %c0_i32_0 = arith.constant 0 : i32
    %c0_i32_1 = arith.constant 0 : i32
    return %c0_i32, %c0_i32_0 : i32, i32
  }
  func.func @transform_7(%arg0: i32, %arg1: i32) -> (i32, i32) {
    %c0_i32 = arith.constant 0 : i32
    %c0_i32_0 = arith.constant 0 : i32
    %c0_i32_1 = arith.constant 0 : i32
    return %c0_i32, %c0_i32_0 : i32, i32
  }
  func.func @transform_8(%arg0: i32, %arg1: i32) -> (i32, i32) {
    %c0_i32 = arith.constant 0 : i32
    %c0_i32_0 = arith.constant 0 : i32
    %c0_i32_1 = arith.constant 0 : i32
    return %c0_i32, %c0_i32_0 : i32, i32
  }
  func.func @transform_9(%arg0: i32, %arg1: i32) -> (i32, i32) {
    %0 = arith.muli %arg0, %arg1 : i32
    %c0_i32 = arith.constant 0 : i32
    %c0_i32_0 = arith.constant 0 : i32
    return %0, %c0_i32 : i32, i32
  }
}

</mosaic_0001>

<llo_original>
// kernel: tpu_custom_call.1
$region0: #{tpu_custom_call.1}
  #allocation0 [shape = 'u32[]', space=smem, size = 0x4, offset = 0x4, fixed_abs, tag = 'smem constant byte address 0x4 - core index']
  #allocation1 [shape = 'u32[72,128]{1,0:T(1,128)}', space=vmem, size = 0x9000, scoped, tag = 'internal scratch']
  #allocation2 [shape = 'f32[1,64]{1,0:T(1,128)}', space=vmem, size = 0x200, scoped, tag = 'scratch operand']
  #allocation3 [shape = 'f32[1,64]{1,0:T(1,128)}', space=vmem, size = 0x200, scoped, tag = 'scratch operand']
  #allocation4 [shape = 'f32[1,1]{1,0:T(1,128)S(1)}', space=vmem, size = 0x200, scoped, tag = 'scoped memory for tpu_custom_call.1']
  %s0 = inlined_call_operand.hbm [shape: f32[8,32], index: 0, kind: input, shape index: {}]
  %s1 = inlined_call_operand.hbm [shape: f32[32,64], index: 1, kind: input, shape index: {}]
  %s2 = inlined_call_operand.vmem [shape: f32[1,64], index: 2, kind: input, shape index: {}]
  %s3 = inlined_call_operand.hbm [shape: f32[64,64], index: 3, kind: input, shape index: {}]
  %s4 = inlined_call_operand.vmem [shape: f32[1,64], index: 4, kind: input, shape index: {}]
  %s5 = inlined_call_operand.vmem [shape: f32[1,64], index: 5, kind: input, shape index: {}]
  %s6 = inlined_call_operand.vmem [shape: f32[1,64], index: 6, kind: input, shape index: {}]
  %s7 = inlined_call_operand.vmem [shape: f32[1,64], index: 7, kind: input, shape index: {}]
  %s8 = inlined_call_operand.<no memory space> [shape: f32[1,1], index: 8, kind: input, shape index: {}]
  %s9 = inlined_call_operand.vmem [shape: f32[8,1], index: 9, kind: output, shape index: {}]
  %s10 = sld [smem:[#allocation0]]
  $region93: #{tpu_custom_call.1} parent=0
    _
  %s12 = ssub.s32 1, %s10
  %s13 = scalar_select 0, %s12, %s10
  %v14 = vstv %s8
  %15 = vst [vmem:[#allocation4] sm:$0x1] %v14
  $region1: #{tpu_custom_call.1} parent=0
    #allocation5 [shape = 'u8[4096]{0}', space=vmem, size = 0x1000, scoped, tag = 'input window, operand 0, single buffered']
    #allocation6 [shape = 's32[2]{0}', space=sflag, size = 0x8, scoped, tag = 'scoped memory for tpu_custom_call.1']
    #allocation7 [shape = 'u8[16384]{0}', space=vmem, size = 0x4000, scoped, tag = 'input window, operand 1, single buffered']
    #allocation8 [shape = 's32[1]{0}', space=sflag, size = 0x4, scoped, tag = 'scoped memory for tpu_custom_call.1']
    #allocation9 [shape = 'u8[32768]{0}', space=vmem, size = 0x8000, scoped, tag = 'input window, operand 3, single buffered']
    %16 = vsyncpa [#allocation6], 0
    %17 = vsyncpa [#allocation8], 0
    loop: start=0, step=1, limit=4
    $region2: #{tpu_custom_call.1} parent=1 // loop_pre_header
      _
    $region3: #{tpu_custom_call.1} parent=1 // loop_header
      %s19 = sphi 0, %s23
      %p20 = scmp.ge.s32.totalorder %s19, 4
      %s26 = sphi 0, %s38
      %s27 = sphi 0, %s34
      %s28 = sphi 0, %s26
      %s29 = sphi 0, %s27
      %s30 = sphi 0, %s28
      %s31 = sphi 0, %s29
      %s41 = sphi 0, %s43
      %s44 = sphi 0, %s41
      %s45 = sphi 0, %s44
      %s61 = sphi 0, %s45
      %s65 = sphi 0, %s65
      %s67 = sphi 0, %s65
      %s68 = sphi 0, %s67
      %s82 = sphi 0, %s68
      %s86 = sphi 0, %s86
      %s88 = sphi 0, %s86
      %s89 = sphi 0, %s88
      %s103 = sphi 0, %s89
      %s107 = sphi 0, %s107
      %s109 = sphi 0, %s107
      %s110 = sphi 0, %s109
      %s124 = sphi 0, %s110
      %s128 = sphi 0, %s128
      %s130 = sphi 0, %s128
      %s131 = sphi 0, %s130
      %s145 = sphi 0, %s131
      %s149 = sphi 0, %s149
      %s151 = sphi 0, %s149
      %s152 = sphi 0, %s151
      %s166 = sphi 0, %s152
      %s170 = sphi 0, %s170
      %s172 = sphi 0, %s170
      %s173 = sphi 0, %s172
      %s187 = sphi 0, %s173
      %s191 = sphi 0, %s191
      %s193 = sphi 0, %s191
      %s194 = sphi 0, %s193
      %s208 = sphi 0, %s194
      %s212 = sphi 0, %s212
      %s214 = sphi 0, %s212
      %s215 = sphi 0, %s214
      %s229 = sphi 0, %s215
      %s237 = sphi 0, %s239
      %s240 = sphi 0, %s237
      %s241 = sphi 0, %s240
      %s257 = sphi 0, %s241
    $region4: #{tpu_custom_call.1} parent=1 // loop_header_branch
      %22 = sbr.rel (%p20) target = $region8
    $region5: #{tpu_custom_call.1} parent=1 // loop_body
      %s24 = ssub.s32 %s19, 1
      %s25 = ssub.s32 %s19, 2
      %s32 = sadd.s32 1, %s27
      %p33 = scmp.ge.s32.totalorder %s32, 1
      %s34 = scalar_select %p33, 0, %s32
      %s35 = sadd.s32 1, %s26
      %s36 = scalar_select %p33, %s35, %s26
      %p37 = scmp.ge.s32.totalorder %s36, 2
      %s38 = scalar_select %p37, 0, %s36
      %s39 = ssub.s32 %s27, %s34
      %p40 = scmp.eq.s32.totalorder %s39, 0
      %s42 = sadd.s32 %s41, 1
      %s43 = scalar_select %p40, %s41, %s42
      %p46 = pneg %p40
      %p47 = scmp.eq.s32.totalorder %s19, 1
      %p48 = por %p46, %p47
      %p49 = scmp.ne.s32.totalorder %s41, %s44
      %p50 = scmp.eq.s32.totalorder %s19, 0
      %p51 = por %p49, %p50
      %p52 = scmp.ne.s32.totalorder %s41, %s44
      %p53 = scmp.eq.s32.totalorder %s24, 1
      %p54 = por %p52, %p53
      %p55 = scmp.ne.s32.totalorder %s44, %s45
      %p56 = scmp.eq.s32.totalorder %s24, 0
      %p57 = por %p55, %p56
      %p58 = scmp.ne.s32.totalorder %s44, %s45
      %p59 = scmp.eq.s32.totalorder %s25, 1
      %p60 = por %p58, %p59
      %p62 = scmp.ne.s32.totalorder %s45, %s61
      %p63 = scmp.eq.s32.totalorder %s25, 0
      %p64 = por %p62, %p63
      %s66 = sadd.s32 %s65, 1
      %p69 = scmp.eq.s32.totalorder %s19, 1
      %p70 = scmp.ne.s32.totalorder %s65, %s67
      %p71 = scmp.eq.s32.totalorder %s19, 0
      %p72 = por %p70, %p71
      %p73 = scmp.ne.s32.totalorder %s65, %s67
      %p74 = scmp.eq.s32.totalorder %s24, 1
      %p75 = por %p73, %p74
      %p76 = scmp.ne.s32.totalorder %s67, %s68
      %p77 = scmp.eq.s32.totalorder %s24, 0
      %p78 = por %p76, %p77
      %p79 = scmp.ne.s32.totalorder %s67, %s68
      %p80 = scmp.eq.s32.totalorder %s25, 1
      %p81 = por %p79, %p80
      %p83 = scmp.ne.s32.totalorder %s68, %s82
      %p84 = scmp.eq.s32.totalorder %s25, 0
      %p85 = por %p83, %p84
      %s87 = sadd.s32 %s86, 1
      %p90 = scmp.eq.s32.totalorder %s19, 1
      %p91 = scmp.ne.s32.totalorder %s86, %s88
      %p92 = scmp.eq.s32.totalorder %s19, 0
      %p93 = por %p91, %p92
      %p94 = scmp.ne.s32.totalorder %s86, %s88
      %p95 = scmp.eq.s32.totalorder %s24, 1
      %p96 = por %p94, %p95
      %p97 = scmp.ne.s32.totalorder %s88, %s89
      %p98 = scmp.eq.s32.totalorder %s24, 0
      %p99 = por %p97, %p98
      %p100 = scmp.ne.s32.totalorder %s88, %s89
      %p101 = scmp.eq.s32.totalorder %s25, 1
      %p102 = por %p100, %p101
      %p104 = scmp.ne.s32.totalorder %s89, %s103
      %p105 = scmp.eq.s32.totalorder %s25, 0
      %p106 = por %p104, %p105
      %s108 = sadd.s32 %s107, 1
      %p111 = scmp.eq.s32.totalorder %s19, 1
      %p112 = scmp.ne.s32.totalorder %s107, %s109
      %p113 = scmp.eq.s32.totalorder %s19, 0
      %p114 = por %p112, %p113
      %p115 = scmp.ne.s32.totalorder %s107, %s109
      %p116 = scmp.eq.s32.totalorder %s24, 1
      %p117 = por %p115, %p116
      %p118 = scmp.ne.s32.totalorder %s109, %s110
      %p119 = scmp.eq.s32.totalorder %s24, 0
      %p120 = por %p118, %p119
      %p121 = scmp.ne.s32.totalorder %s109, %s110
      %p122 = scmp.eq.s32.totalorder %s25, 1
      %p123 = por %p121, %p122
      %p125 = scmp.ne.s32.totalorder %s110, %s124
      %p126 = scmp.eq.s32.totalorder %s25, 0
      %p127 = por %p125, %p126
      %s129 = sadd.s32 %s128, 1
      %p132 = scmp.eq.s32.totalorder %s19, 1
      %p133 = scmp.ne.s32.totalorder %s128, %s130
      %p134 = scmp.eq.s32.totalorder %s19, 0
      %p135 = por %p133, %p134
      %p136 = scmp.ne.s32.totalorder %s128, %s130
      %p137 = scmp.eq.s32.totalorder %s24, 1
      %p138 = por %p136, %p137
      %p139 = scmp.ne.s32.totalorder %s130, %s131
      %p140 = scmp.eq.s32.totalorder %s24, 0
      %p141 = por %p139, %p140
      %p142 = scmp.ne.s32.totalorder %s130, %s131
      %p143 = scmp.eq.s32.totalorder %s25, 1
      %p144 = por %p142, %p143
      %p146 = scmp.ne.s32.totalorder %s131, %s145
      %p147 = scmp.eq.s32.totalorder %s25, 0
      %p148 = por %p146, %p147
      %s150 = sadd.s32 %s149, 1
      %p153 = scmp.eq.s32.totalorder %s19, 1
      %p154 = scmp.ne.s32.totalorder %s149, %s151
      %p155 = scmp.eq.s32.totalorder %s19, 0
      %p156 = por %p154, %p155
      %p157 = scmp.ne.s32.totalorder %s149, %s151
      %p158 = scmp.eq.s32.totalorder %s24, 1
      %p159 = por %p157, %p158
      %p160 = scmp.ne.s32.totalorder %s151, %s152
      %p161 = scmp.eq.s32.totalorder %s24, 0
      %p162 = por %p160, %p161
      %p163 = scmp.ne.s32.totalorder %s151, %s152
      %p164 = scmp.eq.s32.totalorder %s25, 1
      %p165 = por %p163, %p164
      %p167 = scmp.ne.s32.totalorder %s152, %s166
      %p168 = scmp.eq.s32.totalorder %s25, 0
      %p169 = por %p167, %p168
      %s171 = sadd.s32 %s170, 1
      %p174 = scmp.eq.s32.totalorder %s19, 1
      %p175 = scmp.ne.s32.totalorder %s170, %s172
      %p176 = scmp.eq.s32.totalorder %s19, 0
      %p177 = por %p175, %p176
      %p178 = scmp.ne.s32.totalorder %s170, %s172
      %p179 = scmp.eq.s32.totalorder %s24, 1
      %p180 = por %p178, %p179
      %p181 = scmp.ne.s32.totalorder %s172, %s173
      %p182 = scmp.eq.s32.totalorder %s24, 0
      %p183 = por %p181, %p182
      %p184 = scmp.ne.s32.totalorder %s172, %s173
      %p185 = scmp.eq.s32.totalorder %s25, 1
      %p186 = por %p184, %p185
      %p188 = scmp.ne.s32.totalorder %s173, %s187
      %p189 = scmp.eq.s32.totalorder %s25, 0
      %p190 = por %p188, %p189
      %s192 = sadd.s32 %s191, 1
      %p195 = scmp.eq.s32.totalorder %s19, 1
      %p196 = scmp.ne.s32.totalorder %s191, %s193
      %p197 = scmp.eq.s32.totalorder %s19, 0
      %p198 = por %p196, %p197
      %p199 = scmp.ne.s32.totalorder %s191, %s193
      %p200 = scmp.eq.s32.totalorder %s24, 1
      %p201 = por %p199, %p200
      %p202 = scmp.ne.s32.totalorder %s193, %s194
      %p203 = scmp.eq.s32.totalorder %s24, 0
      %p204 = por %p202, %p203
      %p205 = scmp.ne.s32.totalorder %s193, %s194
      %p206 = scmp.eq.s32.totalorder %s25, 1
      %p207 = por %p205, %p206
      %p209 = scmp.ne.s32.totalorder %s194, %s208
      %p210 = scmp.eq.s32.totalorder %s25, 0
      %p211 = por %p209, %p210
      %s213 = sadd.s32 %s212, 1
      %p216 = scmp.eq.s32.totalorder %s19, 1
      %p217 = scmp.ne.s32.totalorder %s212, %s214
      %p218 = scmp.eq.s32.totalorder %s19, 0
      %p219 = por %p217, %p218
      %p220 = scmp.ne.s32.totalorder %s212, %s214
      %p221 = scmp.eq.s32.totalorder %s24, 1
      %p222 = por %p220, %p221
      %p223 = scmp.ne.s32.totalorder %s214, %s215
      %p224 = scmp.eq.s32.totalorder %s24, 0
      %p225 = por %p223, %p224
      %p226 = scmp.ne.s32.totalorder %s214, %s215
      %p227 = scmp.eq.s32.totalorder %s25, 1
      %p228 = por %p226, %p227
      %p230 = scmp.ne.s32.totalorder %s215, %s229
      %p231 = scmp.eq.s32.totalorder %s25, 0
      %p232 = por %p230, %p231
      %s233 = smul.u32 %s26, %s27
      %s234 = smul.u32 %s38, %s34
      %s235 = ssub.s32 %s233, %s234
      %p236 = scmp.eq.s32.totalorder %s235, 0
      %s238 = sadd.s32 %s237, 1
      %s239 = scalar_select %p236, %s237, %s238
      %p242 = pneg %p236
      %p243 = scmp.eq.s32.totalorder %s19, 1
      %p244 = por %p242, %p243
      %p245 = scmp.ne.s32.totalorder %s237, %s240
      %p246 = scmp.eq.s32.totalorder %s19, 0
      %p247 = por %p245, %p246
      %p248 = scmp.ne.s32.totalorder %s237, %s240
      %p249 = scmp.eq.s32.totalorder %s24, 1
      %p250 = por %p248, %p249
      %p251 = scmp.ne.s32.totalorder %s240, %s241
      %p252 = scmp.eq.s32.totalorder %s24, 0
      %p253 = por %p251, %p252
      %p254 = scmp.ne.s32.totalorder %s240, %s241
      %p255 = scmp.eq.s32.totalorder %s25, 1
      %p256 = por %p254, %p255
      %p258 = scmp.ne.s32.totalorder %s241, %s257
      %p259 = scmp.eq.s32.totalorder %s25, 0
      %p260 = por %p258, %p259
      %p261 = scmp.le.s32.totalorder 1, %s19
      %p262 = scmp.lt.s32.totalorder %s19, 3
      %p263 = pnand %p261, %p262
      %p264 = pneg %p263
      // Predicated region
      $region9: #{tpu_custom_call.1} parent=5 // pred_check
        _
      $region10: #{tpu_custom_call.1} parent=5 // pred_check_branch
        %266 = sbr.rel (%p263) target = $region12
      $region11: #{tpu_custom_call.1} parent=5 // pred_region
        %s267 = ssub.s32 %s19, 1
        // Predicated region
        $region13: #{tpu_custom_call.1} parent=11 // pred_check
          %p268 = pneg %p57
        $region14: #{tpu_custom_call.1} parent=11 // pred_check_branch
          %270 = sbr.rel (%p268) target = $region16
        $region15: #{tpu_custom_call.1} parent=11 // pred_region
          %272 = vsyncadd [#allocation6], 0
          %s273 = smul.addr %s29, 8
          %s274 = scalar_lea.hbm %s0, %s273
          %s276 = sshll.u32 %s274, 4
          %s277 = int_to_ptr.hbm [resolvable:$true] %s276
          %s278 = sshll.u32 [#allocation5], 4
          %s279 = int_to_ptr.vmem [resolvable:$true] %s278
          %281 = dma.hbm_to_vmem [thread:$0]  %s277, 128, %s279, [#allocation6]
        $region16: #{tpu_custom_call.1} parent=11 // pred_fallthru
          _
        // Predicated region
        $region17: #{tpu_custom_call.1} parent=11 // pred_check
          %p282 = pneg %p78
        $region18: #{tpu_custom_call.1} parent=11 // pred_check_branch
          %284 = sbr.rel (%p282) target = $region20
        $region19: #{tpu_custom_call.1} parent=11 // pred_region
          %286 = vsyncadd [#allocation8], 0
          %s287 = sshll.u32 %s1, 4
          %s288 = int_to_ptr.hbm [resolvable:$true] %s287
          %s289 = sshll.u32 [#allocation7], 4
          %s290 = int_to_ptr.vmem [resolvable:$true] %s289
          %295 = dma.hbm_to_vmem [thread:$0]  %s288, 512, %s290, [#allocation8], 128, 128, 8
        $region20: #{tpu_custom_call.1} parent=11 // pred_fallthru
          _
        // Predicated region
        $region21: #{tpu_custom_call.1} parent=11 // pred_check
          %p296 = pneg %p99
        $region22: #{tpu_custom_call.1} parent=11 // pred_check_branch
          %298 = sbr.rel (%p296) target = $region24
        $region23: #{tpu_custom_call.1} parent=11 // pred_region
          _
        $region24: #{tpu_custom_call.1} parent=11 // pred_fallthru
          _
        // Predicated region
        $region25: #{tpu_custom_call.1} parent=11 // pred_check
          %p299 = pneg %p120
        $region26: #{tpu_custom_call.1} parent=11 // pred_check_branch
          %301 = sbr.rel (%p299) target = $region28
        $region27: #{tpu_custom_call.1} parent=11 // pred_region
          %303 = vsyncadd [#allocation8], 0
          %s304 = sshll.u32 %s3, 4
          %s305 = int_to_ptr.hbm [resolvable:$true] %s304
          %s306 = sshll.u32 [#allocation9], 4
          %s307 = int_to_ptr.vmem [resolvable:$true] %s306
          %312 = dma.hbm_to_vmem [thread:$0]  %s305, 1024, %s307, [#allocation8], 128, 128, 8
        $region28: #{tpu_custom_call.1} parent=11 // pred_fallthru
          _
        // Predicated region
        $region29: #{tpu_custom_call.1} parent=11 // pred_check
          %p313 = pneg %p141
        $region30: #{tpu_custom_call.1} parent=11 // pred_check_branch
          %315 = sbr.rel (%p313) target = $region32
        $region31: #{tpu_custom_call.1} parent=11 // pred_region
          _
        $region32: #{tpu_custom_call.1} parent=11 // pred_fallthru
          _
        // Predicated region
        $region33: #{tpu_custom_call.1} parent=11 // pred_check
          %p316 = pneg %p162
        $region34: #{tpu_custom_call.1} parent=11 // pred_check_branch
          %318 = sbr.rel (%p316) target = $region36
        $region35: #{tpu_custom_call.1} parent=11 // pred_region
          _
        $region36: #{tpu_custom_call.1} parent=11 // pred_fallthru
          _
        // Predicated region
        $region37: #{tpu_custom_call.1} parent=11 // pred_check
          %p319 = pneg %p183
        $region38: #{tpu_custom_call.1} parent=11 // pred_check_branch
          %321 = sbr.rel (%p319) target = $region40
        $region39: #{tpu_custom_call.1} parent=11 // pred_region
          _
        $region40: #{tpu_custom_call.1} parent=11 // pred_fallthru
          _
        // Predicated region
        $region41: #{tpu_custom_call.1} parent=11 // pred_check
          %p322 = pneg %p204
        $region42: #{tpu_custom_call.1} parent=11 // pred_check_branch
          %324 = sbr.rel (%p322) target = $region44
        $region43: #{tpu_custom_call.1} parent=11 // pred_region
          _
        $region44: #{tpu_custom_call.1} parent=11 // pred_fallthru
          _
        // Predicated region
        $region45: #{tpu_custom_call.1} parent=11 // pred_check
          %p325 = pneg %p225
        $region46: #{tpu_custom_call.1} parent=11 // pred_check_branch
          %327 = sbr.rel (%p325) target = $region48
        $region47: #{tpu_custom_call.1} parent=11 // pred_region
          _
        $region48: #{tpu_custom_call.1} parent=11 // pred_fallthru
          _
      $region12: #{tpu_custom_call.1} parent=5 // pred_fallthru
        _
      %p328 = scmp.lt.s32.totalorder %s19, 2
      // Predicated region
      $region49: #{tpu_custom_call.1} parent=5 // pred_check
        %p329 = pneg %p328
      $region50: #{tpu_custom_call.1} parent=5 // pred_check_branch
        %331 = sbr.rel (%p329) target = $region52
      $region51: #{tpu_custom_call.1} parent=5 // pred_region
        _
      $region52: #{tpu_custom_call.1} parent=5 // pred_fallthru
        _
      %p332 = scmp.le.s32.totalorder 1, %s19
      %p333 = scmp.lt.s32.totalorder %s19, 3
      %p334 = pnand %p332, %p333
      %p335 = pneg %p334
      // Predicated region
      $region53: #{tpu_custom_call.1} parent=5 // pred_check
        _
      $region54: #{tpu_custom_call.1} parent=5 // pred_check_branch
        %337 = sbr.rel (%p334) target = $region56
      $region55: #{tpu_custom_call.1} parent=5 // pred_region
        %s338 = ssub.s32 %s19, 1
        // Predicated region
        $region57: #{tpu_custom_call.1} parent=55 // pred_check
          %p339 = pneg %p57
        $region58: #{tpu_custom_call.1} parent=55 // pred_check_branch
          %341 = sbr.rel (%p339) target = $region60
        $region59: #{tpu_custom_call.1} parent=55 // pred_region
          %343 = dma.done [#allocation6], 128
        $region60: #{tpu_custom_call.1} parent=55 // pred_fallthru
          _
        // Predicated region
        $region61: #{tpu_custom_call.1} parent=55 // pred_check
          %p344 = pneg %p78
        $region62: #{tpu_custom_call.1} parent=55 // pred_check_branch
          %346 = sbr.rel (%p344) target = $region64
        $region63: #{tpu_custom_call.1} parent=55 // pred_region
          %348 = dma.done [#allocation8], 512
        $region64: #{tpu_custom_call.1} parent=55 // pred_fallthru
          _
        // Predicated region
        $region65: #{tpu_custom_call.1} parent=55 // pred_check
          %p349 = pneg %p120
        $region66: #{tpu_custom_call.1} parent=55 // pred_check_branch
          %351 = sbr.rel (%p349) target = $region68
        $region67: #{tpu_custom_call.1} parent=55 // pred_region
          %353 = dma.done [#allocation8], 1024
        $region68: #{tpu_custom_call.1} parent=55 // pred_fallthru
          _
        %p354 = pneg %p57
        %p355 = pneg %p54
        %p356 = pneg %p78
        %p357 = pneg %p75
        %p358 = pneg %p99
        %p359 = pneg %p96
        %p360 = pneg %p120
        %p361 = pneg %p117
        %p362 = pneg %p141
        %p363 = pneg %p138
        %p364 = pneg %p162
        %p365 = pneg %p159
        %p366 = pneg %p183
        %p367 = pneg %p180
        %p368 = pneg %p204
        %p369 = pneg %p201
        %p370 = pneg %p225
        %p371 = pneg %p222
        %p372 = pneg %p253
        %p373 = pneg %p250
        %s374 = smul.u32 %s28, %s29
        %p375 = scmp.lt.s32.totalorder %s374, 0
        %s376 = scalar_select %p375, %s374, 0
        %s377 = smul.addr %s376, 8
        %s378 = scalar_lea.vmem %s9, %s377
        %s379 = smul.u32 %s28, %s29
        %p380 = scmp.lt.s32.totalorder %s379, 0
        %s381 = scalar_select %p380, %s379, 0
        %s382 = smul.addr %s381, 8
        %s383 = scalar_lea.vmem %s9, %s382
        %s384 = smul.u32 %s28, %s29
        %p385 = scmp.eq.s32.totalorder %s28, 0
        %p386 = scmp.eq.s32.totalorder %s29, 0
        %p387 = pnand %p385, %p386
        %p388 = pneg %p387
        // Predicated region
        $region69: #{tpu_custom_call.1} parent=55 // pred_check
          _
        $region70: #{tpu_custom_call.1} parent=55 // pred_check_branch
          %390 = sbr.rel (%p387) target = $region72
        $region71: #{tpu_custom_call.1} parent=55 // pred_region
          %vm391 = vcmask 516096
          %392 = vst.msk [vmem:[#allocation2] sm:$0x1] %vm391, 0.0
          %393 = vst.msk [vmem:[#allocation3] sm:$0x1] %vm391, 0.0
        $region72: #{tpu_custom_call.1} parent=55 // pred_fallthru
          _
        %v394 = vld [vmem:[#allocation5] sm:$0xff]
        %v395 = vld [vmem:[#allocation7] sm:$0xff]
        %v396 = vld [vmem:[#allocation7 + $0x8] sm:$0xff]
        %v397 = vld [vmem:[#allocation7 + $0x10] sm:$0xff]
        %v398 = vld [vmem:[#allocation7 + $0x18] sm:$0xff]
        %v399 = vld [vmem:[%s2] sm:$0x1]
        %v401 = vperm.slane %v399, 0
        %vm403 = vcmask 261120
        %v405 = vsel %vm403, %v394, 0
        %407 = vmatpush.msra.mxu0 0.0
        %408 = vmatpush.msra.mxu0 0.0
        %409 = vmatpush.msra.mxu0 0.0
        %410 = vmatpush.msra.mxu0 0.0
        %411 = vmatpush.msra.mxu0 0.0
        %412 = vmatpush.msra.mxu0 0.0
        %413 = vmatpush.msra.mxu0 0.0
        %414 = vmatpush.msra.mxu0 0.0
        %415 = vmatpush.msra.mxu0 0.0
        %416 = vmatpush.msra.mxu0 0.0
        %417 = vmatpush.msra.mxu0 0.0
        %418 = vmatpush.msra.mxu0 0.0
        %419 = vmatpush.msra.mxu0 %v398
        %420 = vmatpush.msra.mxu0 %v397
        %421 = vmatpush.msra.mxu0 %v396
        %422 = vmatpush.msra.mxu0 %v395
        %423 = vmatmul.f32.gmra.mxu0 %v405
        %v424 = vpop.f32.mrf.mxu0
        %v425 = vadd.f32 %v401, %v424
        %426 = vdwg.mxu0
        %vm427 = vcmp.ge.f32.partialorder %v425, 0.0
        %v428 = vmul.f32 %v425, 0.2
        %v429 = vsel %vm427, %v425, %v428
        %v430 = vld [vmem:[#allocation9] sm:$0xff]
        %v431 = vld [vmem:[#allocation9 + $0x8] sm:$0xff]
        %v432 = vld [vmem:[#allocation9 + $0x10] sm:$0xff]
        %v433 = vld [vmem:[#allocation9 + $0x18] sm:$0xff]
        %v434 = vld [vmem:[#allocation9 + $0x20] sm:$0xff]
        %v435 = vld [vmem:[#allocation9 + $0x28] sm:$0xff]
        %v436 = vld [vmem:[#allocation9 + $0x30] sm:$0xff]
        %v437 = vld [vmem:[#allocation9 + $0x38] sm:$0xff]
        %v438 = vld [vmem:[%s4] sm:$0x1]
        %v440 = vperm.slane %v438, 0
        %vm442 = vcmask 523264
        %v444 = vsel %vm442, %v429, 0
        %446 = vmatpush.msra.mxu0 0.0
        %447 = vmatpush.msra.mxu0 0.0
        %448 = vmatpush.msra.mxu0 0.0
        %449 = vmatpush.msra.mxu0 0.0
        %450 = vmatpush.msra.mxu0 0.0
        %451 = vmatpush.msra.mxu0 0.0
        %452 = vmatpush.msra.mxu0 0.0
        %453 = vmatpush.msra.mxu0 0.0
        %454 = vmatpush.msra.mxu0 %v437
        %455 = vmatpush.msra.mxu0 %v436
        %456 = vmatpush.msra.mxu0 %v435
        %457 = vmatpush.msra.mxu0 %v434
        %458 = vmatpush.msra.mxu0 %v433
        %459 = vmatpush.msra.mxu0 %v432
        %460 = vmatpush.msra.mxu0 %v431
        %461 = vmatpush.msra.mxu0 %v430
        %462 = vmatmul.f32.gmra.mxu0 %v444
        %v463 = vpop.f32.mrf.mxu0
        %v464 = vadd.f32 %v440, %v463
        %465 = vdwg.mxu0
        // Predicated region
        $region73: #{tpu_custom_call.1} parent=55 // pred_check
          %p466 = pneg %p385
        $region74: #{tpu_custom_call.1} parent=55 // pred_check_branch
          %468 = sbr.rel (%p466) target = $region76
        $region75: #{tpu_custom_call.1} parent=55 // pred_region
          %s469 = smul.u32 %s29, 8
          %v470 = vlaneseq
          %v471 = vshrl.u32 %v470, 7
          %v472 = vstv %s469
          %v473 = vadd.s32 %v472, %v471
          %vm474 = vcmp.lt.s32.totalorder %v473, 8
          %v475 = vsel %vm474, 1, 0
          %vm476 = vcmp.eq.s32.totalorder %v475, 1
          %v477 = vsel %vm476, %v464, 0.0
          %v478 = vld [vmem:[#allocation2] sm:$0x1]
          %v479 = vsel %vm442, %v477, 0.0
          %v480 = vrot.slane %v479, 4
          %v481 = vadd.f32 %v479, %v480
          %v482 = vrot.slane %v481, 2
          %v483 = vadd.f32 %v481, %v482
          %v484 = vrot.slane %v483, 1
          %v485 = vadd.f32 %v483, %v484
          %v486 = vadd.f32 %v478, %v485
          %vm487 = vcmask 516096
          %488 = vst.msk [vmem:[#allocation2] sm:$0x1] %vm487, %v486
          %v489 = vld [vmem:[#allocation3] sm:$0x1]
          %v490 = vmul.f32 %v477, %v477
          %v491 = vsel %vm442, %v490, 0.0
          %v492 = vrot.slane %v491, 4
          %v493 = vadd.f32 %v491, %v492
          %v494 = vrot.slane %v493, 2
          %v495 = vadd.f32 %v493, %v494
          %v496 = vrot.slane %v495, 1
          %v497 = vadd.f32 %v495, %v496
          %v498 = vadd.f32 %v489, %v497
          %499 = vst.msk [vmem:[#allocation3] sm:$0x1] %vm487, %v498
        $region76: #{tpu_custom_call.1} parent=55 // pred_fallthru
          _
        %p500 = scmp.eq.s32.totalorder %s28, 1
        // Predicated region
        $region77: #{tpu_custom_call.1} parent=55 // pred_check
          %p501 = pneg %p500
        $region78: #{tpu_custom_call.1} parent=55 // pred_check_branch
          %503 = sbr.rel (%p501) target = $region80
        $region79: #{tpu_custom_call.1} parent=55 // pred_region
          %v504 = vld [vmem:[#allocation2] sm:$0x1]
          %v505 = vmul.f32 %v504, 0.125
          %v506 = vld [vmem:[#allocation3] sm:$0x1]
          %v507 = vmul.f32 %v506, 0.125
          %v508 = vmul.f32 %v505, %v505
          %v509 = vsub.f32 %v507, %v508
          %v510 = vmax.f32 %v509, 0.0
          %v511 = vld [vmem:[%s5] sm:$0x1]
          %v512 = vadd.f32 %v510, 1e-05
          %v513 = vrsqrt.pop %v512
          %v514 = vmul.f32 %v513, %v512
          %v515 = vmul.f32 %v514, %v513
          %v516 = vmul.f32 0.5, %v515
          %v517 = vsub.f32 1.5, %v516
          %v518 = vmul.f32 %v513, %v517
          %vm519 = vweird.f32 %v512
          %vm520 = vweird.f32 %v513
          %vm521 = vmor %vm519, %vm520
          %v522 = vsel %vm521, %v513, %v518
          %v523 = vmul.f32 %v511, %v522
          %v525 = vperm.slane %v505, 0
          %v527 = vsub.f32 %v464, %v525
          %v529 = vperm.slane %v523, 0
          %v531 = vmul.f32 %v527, %v529
          %v532 = vld [vmem:[%s6] sm:$0x1]
          %v534 = vperm.slane %v532, 0
          %v536 = vadd.f32 %v531, %v534
          %vm537 = vcmp.ge.f32.partialorder %v536, 0.0
          %v538 = vmul.f32 %v536, 0.2
          %v539 = vsel %vm537, %v536, %v538
          %v540 = vld [vmem:[%s7] sm:$0x1]
          %v542 = vperm.slane %v540, 0
          %v544 = vmul.f32 %v539, %v542
          %v545 = vsel %vm442, %v544, 0.0
          %546 = vadd.xlane.f32.xlu0 %v545
          %v547 = vpop.xlane.xlu0 %546
          %v548 = vld [vmem:[#allocation4] sm:$0x1]
          %v550 = vperm.slane %v548, 0
          %v552 = vadd.f32 %v547, %v550
          %vm553 = vcmask 7168
          %554 = vst.msk [vmem:[%s383] sm:$0xff] %vm553, %v552
        $region80: #{tpu_custom_call.1} parent=55 // pred_fallthru
          _
        %s555 = smul.u32 %s28, %s29
        %p556 = scmp.lt.s32.totalorder %s555, 0
        %s557 = scalar_select %p556, %s555, 0
        %s558 = smul.addr %s557, 8
        %s559 = scalar_lea.vmem %s9, %s558
        // Predicated region
        $region81: #{tpu_custom_call.1} parent=55 // pred_check
          %p560 = pneg %p250
        $region82: #{tpu_custom_call.1} parent=55 // pred_check_branch
          %562 = sbr.rel (%p560) target = $region84
        $region83: #{tpu_custom_call.1} parent=55 // pred_region
          %s563 = smul.u32 %s28, %s29
        $region84: #{tpu_custom_call.1} parent=55 // pred_fallthru
          _
      $region56: #{tpu_custom_call.1} parent=5 // pred_fallthru
        _
      %p564 = scmp.le.s32.totalorder 2, %s19
      // Predicated region
      $region85: #{tpu_custom_call.1} parent=5 // pred_check
        %p565 = pneg %p564
      $region86: #{tpu_custom_call.1} parent=5 // pred_check_branch
        %567 = sbr.rel (%p565) target = $region88
      $region87: #{tpu_custom_call.1} parent=5 // pred_region
        %s568 = ssub.s32 %s19, 2
        // Predicated region
        $region89: #{tpu_custom_call.1} parent=87 // pred_check
          %p569 = pneg %p256
        $region90: #{tpu_custom_call.1} parent=87 // pred_check_branch
          %571 = sbr.rel (%p569) target = $region92
        $region91: #{tpu_custom_call.1} parent=87 // pred_region
          %s572 = smul.u32 %s30, %s31
          %p573 = scmp.lt.s32.totalorder %s572, 0
          %s574 = scalar_select %p573, %s572, 0
          %s575 = smul.addr %s574, 8
          %s576 = scalar_lea.vmem %s9, %s575
        $region92: #{tpu_custom_call.1} parent=87 // pred_fallthru
          _
      $region88: #{tpu_custom_call.1} parent=5 // pred_fallthru
        _
    $region6: #{tpu_custom_call.1} parent=1 // loop_footer
      %s23 = sadd.s32 1, %s19
    $region7: #{tpu_custom_call.1} parent=1 // loop_footer_branch
      %18 = sbr.rel target = $region3
    $region8: #{tpu_custom_call.1} parent=1 // loop_exit
      _
    %577 = vsyncpa [#allocation6], 1
    %s578 = scalar_lea.sflag [#allocation6], 1
    %579 = vsyncpa %s578, 1
    %580 = vsyncpa [#allocation8], 1

</llo_original>
